<compile_context>
chip_gen: v5e
topology: v5e:2x2
jax: 0.10.0
libtpu: 0.0.40
codegen_flags: <defaults>
</compile_context>

<pallas_src>
import jax
import jax.numpy as jnp
from jax import lax
from jax.experimental import pallas as pl
from jax.experimental.pallas import tpu as pltpu

_EPS = 1e-12  # F.normalize default eps (denominator = max(||x||_2, eps))


def _rmsnorm_kernel(x_ref, g_ref, o_ref):
    # x_ref: (TB, C, TN) or (TB, C, TS, 128) -- channel axis is always axis 1.
    # g_ref: (C, 1) or (C, 1, 1) gain, already pre-scaled by sqrt(W).
    x = x_ref[...].astype(jnp.float32)
    g = g_ref[...].astype(jnp.float32)
    # Channel reduction (axis 1). In the general layout this is a cross-sublane
    # reduce (XLU, idle here); in the small-C layout it is plain VPU adds.
    sumsq = jnp.sum(x * x, axis=1, keepdims=True)
    # 1 / max(||x||, eps) == rsqrt(max(sum(x^2), eps^2)); rsqrt runs on the EUP.
    inv = lax.rsqrt(jnp.maximum(sumsq, _EPS * _EPS))
    o_ref[...] = (x * inv * g).astype(o_ref.dtype)


def _round_up(v, m):
    return -(-v // m) * m


def _pick_tile(extent, unit, max_tile):
    """Largest multiple of `unit` <= max_tile; prefer divisors of `extent`.
    If max_tile covers the whole extent, return the full extent (always legal)."""
    cap = max(unit, (max_tile // unit) * unit)
    if cap >= extent:
        return extent
    for t in range(cap, unit - 1, -unit):
        if extent % t == 0:
            return t
    return cap


def _largest_divisor_leq(n, cap):
    cap = max(1, min(n, cap))
    while n % cap:
        cap -= 1
    return cap


def rmsnorm_nchw(x, g, *, target_tile_bytes=4 * 1024 * 1024,
                 vmem_limit_bytes=40 * 1024 * 1024):
    """x: [B, C, H, W], g: [1, C, 1, 1]. Returns [B, C, H, W]."""
    B, C, H, W = x.shape
    N = H * W
    scale = float(W) ** 0.5  # matches x.shape[-1] ** 0.5 in the PyTorch module
    itemsize = jnp.dtype(x.dtype).itemsize
    sublane = max(8, 32 // itemsize)  # sublane multiple: 8 f32, 16 bf16, 32 int8

    cost = pl.CostEstimate(
        flops=3 * B * C * N,
        transcendentals=B * N,
        bytes_accessed=2 * B * C * N * itemsize + C * 4,
    )

    small_c = (C < sublane) and (N >= 128) and (N % 128 == 0)

    if small_c:
        # Small-C layout: pixels fill both sublanes and lanes; no sublane padding
        # waste, and the channel reduce is a handful of cross-vreg VPU adds.
        NL = N // 128
        xr = x.reshape(B, C, NL, 128)
        gr = g.reshape(C, 1, 1).astype(jnp.float32) * scale

        ts = _pick_tile(NL, 8, max(8, target_tile_bytes // (C * 128 * itemsize)))
        blk1 = C * _round_up(ts, 8) * 128 * itemsize  # one-batch tile bytes (padded)
        tb = _largest_divisor_leq(B, max(1, target_tile_bytes // max(1, blk1)))
        # Keep >= 2 grid programs when possible (v7x has 2 TensorCores/chip).
        if pl.cdiv(B, tb) * pl.cdiv(NL, ts) < 2:
            if B >= 2:
                tb = _largest_divisor_leq(B, -(-B // 2))
            elif NL > 8:
                ts = max(8, _round_up(-(-NL // 2), 8))

        grid = (pl.cdiv(B, tb), pl.cdiv(NL, ts))
        block = (tb, C, ts, 128)
        x_spec = pl.BlockSpec(block, lambda b, n: (b, 0, n, 0))
        g_spec = pl.BlockSpec((C, 1, 1), lambda b, n: (0, 0, 0))
        o_spec = pl.BlockSpec(block, lambda b, n: (b, 0, n, 0))
        out_shape = jax.ShapeDtypeStruct((B, C, NL, 128), x.dtype)
    else:
        # General layout: channels on sublanes, pixels on lanes (lane-dense vst).
        c_pad = _round_up(C, sublane)  # account sublane padding in VMEM math
        xr = x.reshape(B, C, N)
        gr = g.reshape(C, 1).astype(jnp.float32) * scale

        if N <= 128:
            tn = N  # full lane extent in one block (legal regardless of N % 128)
        else:
            tn = _pick_tile(N, 128,
                            max(128, target_tile_bytes // (c_pad * itemsize)))
        blk1 = c_pad * _round_up(tn, 128) * itemsize
        tb = _largest_divisor_leq(B, max(1, target_tile_bytes // max(1, blk1)))
        if pl.cdiv(B, tb) * pl.cdiv(N, tn) < 2:
            if B >= 2:
                tb = _largest_divisor_leq(B, -(-B // 2))
            elif N > 128:
                tn = max(128, _round_up(-(-N // 2), 128))

        grid = (pl.cdiv(B, tb), pl.cdiv(N, tn))
        block = (tb, C, tn)
        x_spec = pl.BlockSpec(block, lambda b, n: (b, 0, n))
        g_spec = pl.BlockSpec((C, 1), lambda b, n: (0, 0))
        o_spec = pl.BlockSpec(block, lambda b, n: (b, 0, n))
        out_shape = jax.ShapeDtypeStruct((B, C, N), x.dtype)

    out = pl.pallas_call(
        _rmsnorm_kernel,
        out_shape=out_shape,
        grid_spec=pltpu.PrefetchScalarGridSpec(
            num_scalar_prefetch=0,
            grid=grid,
            in_specs=[x_spec, g_spec],
            out_specs=o_spec,
        ),
        compiler_params=pltpu.CompilerParams(
            dimension_semantics=("parallel", "parallel"),
            vmem_limit_bytes=vmem_limit_bytes,
        ),
        cost_estimate=cost,
    )(xr, gr)

    return out.reshape(B, C, H, W)


def _reference(x, g, W):
    norm = jnp.sqrt(jnp.sum(x * x, axis=1, keepdims=True))
    return x / jnp.maximum(norm, _EPS) * g * (float(W) ** 0.5)


if __name__ == "__main__":
    key = jax.random.PRNGKey(0)

    # Main check: shapes implied by the module (NCHW, C=dim=4).
    B, C, H, W = 2, 4, 16, 16
    x = jax.random.normal(key, (B, C, H, W), dtype=jnp.float32)
    # Deterministic parameter init: nn.Parameter(torch.ones(1, dim, 1, 1))
    g = jnp.ones((1, C, 1, 1), dtype=jnp.float32)

    out = rmsnorm_nchw(x, g)
    out = jax.block_until_ready(out)
    ref = _reference(x, g, W)
    assert out.shape == (B, C, H, W)
    assert jnp.allclose(out, ref, atol=1e-5, rtol=1e-5)

    # Also exercise the general (channels-on-sublanes) path with C >= 8.
    C2 = 16
    x2 = jax.random.normal(jax.random.PRNGKey(1), (B, C2, H, W), dtype=jnp.float32)
    g2 = jnp.ones((1, C2, 1, 1), dtype=jnp.float32)
    out2 = jax.block_until_ready(rmsnorm_nchw(x2, g2))
    assert jnp.allclose(out2, _reference(x2, g2, W), atol=1e-5, rtol=1e-5)

    print("KERNEL_OK")
</pallas_src>

<mosaic_0001>
module attributes {stable_mosaic.version = 11 : i64} {
  func.func @_rmsnorm_kernel(%arg0: i32, %arg1: i32, %arg2: memref<1x4x2x128xf32, #tpu.memory_space<vmem>>, %arg3: memref<4x1x1xf32, #tpu.memory_space<vmem>>, %arg4: memref<1x4x2x128xf32, #tpu.memory_space<vmem>>) attributes {dimension_semantics = [#tpu.dimension_semantics<parallel>, #tpu.dimension_semantics<parallel>], iteration_bounds = array<i64: 2, 1>, scalar_prefetch = 0 : i64, scratch_operands = 0 : i64, tpu.core_type = #tpu.core_type<tc>, window_params = [{transform_indices = @transform_0, window_bounds = array<i64: 1, 4, 2, 128>}, {pipeline_mode = #tpu.pipeline_mode<synchronous>, transform_indices = @transform_1, window_bounds = array<i64: 4, 1, 1>}, {transform_indices = @transform_2, window_bounds = array<i64: 1, 4, 2, 128>}]} {
    %c0 = arith.constant 0 : index
    %c0_0 = arith.constant 0 : index
    %c0_1 = arith.constant 0 : index
    %c0_2 = arith.constant 0 : index
    %0 = vector.load %arg2[%c0, %c0_0, %c0_1, %c0_2] : memref<1x4x2x128xf32, #tpu.memory_space<vmem>>, vector<1x4x2x128xf32>
    %c0_3 = arith.constant 0 : index
    %c0_4 = arith.constant 0 : index
    %c0_5 = arith.constant 0 : index
    %1 = vector.load %arg3[%c0_3, %c0_4, %c0_5] : memref<4x1x1xf32, #tpu.memory_space<vmem>>, vector<4x1x1xf32>
    %2 = arith.mulf %0, %0 : vector<1x4x2x128xf32>
    %cst = arith.constant dense<0.000000e+00> : vector<1x2x128xf32>
    %3 = vector.multi_reduction <add>, %2, %cst [1] : vector<1x4x2x128xf32> to vector<1x2x128xf32>
    %4 = vector.shape_cast %3 : vector<1x2x128xf32> to vector<1x1x2x128xf32>
    %cst_6 = arith.constant 1.000000e-24 : f32
    %5 = vector.broadcast %cst_6 : f32 to vector<1x1x2x128xf32>
    %6 = arith.maximumf %4, %5 : vector<1x1x2x128xf32>
    %7 = math.rsqrt %6 : vector<1x1x2x128xf32>
    %8 = vector.broadcast %7 : vector<1x1x2x128xf32> to vector<1x4x2x128xf32>
    %9 = arith.mulf %0, %8 : vector<1x4x2x128xf32>
    %10 = vector.shape_cast %1 : vector<4x1x1xf32> to vector<1x4x1x1xf32>
    %11 = vector.broadcast %10 : vector<1x4x1x1xf32> to vector<1x4x2x128xf32>
    %12 = arith.mulf %9, %11 : vector<1x4x2x128xf32>
    %c0_7 = arith.constant 0 : index
    %c0_8 = arith.constant 0 : index
    %c0_9 = arith.constant 0 : index
    %c0_10 = arith.constant 0 : index
    %13 = vector.load %arg4[%c0_7, %c0_8, %c0_9, %c0_10] : memref<1x4x2x128xf32, #tpu.memory_space<vmem>>, vector<1x4x2x128xf32>
    tpu.vector_store %arg4[%c0_7, %c0_8, %c0_9, %c0_10], %12 {strides = array<i32>} : memref<1x4x2x128xf32, #tpu.memory_space<vmem>>, vector<1x4x2x128xf32>,
    return
  }
  func.func @transform_0(%arg0: i32, %arg1: i32) -> (i32, i32, i32, i32) {
    %c0_i32 = arith.constant 0 : i32
    %c0_i32_0 = arith.constant 0 : i32
    %c0_i32_1 = arith.constant 0 : i32
    return %arg0, %c0_i32, %arg1, %c0_i32_0 : i32, i32, i32, i32
  }
  func.func @transform_1(%arg0: i32, %arg1: i32) -> (i32, i32, i32) {
    %c0_i32 = arith.constant 0 : i32
    %c0_i32_0 = arith.constant 0 : i32
    %c0_i32_1 = arith.constant 0 : i32
    %c0_i32_2 = arith.constant 0 : i32
    return %c0_i32, %c0_i32_0, %c0_i32_1 : i32, i32, i32
  }
  func.func @transform_2(%arg0: i32, %arg1: i32) -> (i32, i32, i32, i32) {
    %c0_i32 = arith.constant 0 : i32
    %c0_i32_0 = arith.constant 0 : i32
    %c0_i32_1 = arith.constant 0 : i32
    return %arg0, %c0_i32, %arg1, %c0_i32_0 : i32, i32, i32, i32
  }
}

</mosaic_0001>

<llo_original>
// kernel: tpu_custom_call.1
$region0: #{tpu_custom_call.1}
  #allocation0 [shape = 'u32[]', space=smem, size = 0x4, offset = 0x4, fixed_abs, tag = 'smem constant byte address 0x4 - core index']
  #allocation1 [shape = 'u32[72,128]{1,0:T(1,128)}', space=vmem, size = 0x9000, scoped, tag = 'internal scratch']
  %s0 = inlined_call_operand.hbm [shape: f32[2,4,2,128], index: 0, kind: input, shape index: {}]
  %s1 = inlined_call_operand.vmem [shape: f32[4,1,1], index: 1, kind: input, shape index: {}]
  %s2 = inlined_call_operand.hbm [shape: f32[2,4,2,128], index: 2, kind: output, shape index: {}]
  %s3 = sld [smem:[#allocation0]]
  $region45: #{tpu_custom_call.1} parent=0
    _
  %s5 = ssub.s32 1, %s3
  %s6 = scalar_select 0, %s5, %s3
  $region1: #{tpu_custom_call.1} parent=0
    #allocation2 [shape = 'u8[8192]{0}', space=vmem, size = 0x2000, scoped, tag = 'input window, operand 0']
    #allocation3 [shape = 's32[2]{0}', space=sflag, size = 0x8, scoped, tag = 'scoped memory for tpu_custom_call.1']
    #allocation4 [shape = 's32[2]{0}', space=sflag, size = 0x8, scoped, tag = 'scoped memory for tpu_custom_call.1']
    #allocation5 [shape = 'u8[8192]{0}', space=vmem, size = 0x2000, scoped, tag = 'output window, operand 0']
    %7 = vsyncpa [#allocation3], 0
    %s8 = scalar_lea.sflag [#allocation3], 1
    %9 = vsyncpa %s8, 0
    %10 = vsyncpa [#allocation4], 0
    %s11 = scalar_lea.sflag [#allocation4], 1
    %12 = vsyncpa %s11, 0
    loop: start=0, step=1, limit=4
    $region2: #{tpu_custom_call.1} parent=1 // loop_pre_header
      _
    $region3: #{tpu_custom_call.1} parent=1 // loop_header
      %s14 = sphi 0, %s18
      %p15 = scmp.ge.s32.totalorder %s14, 4
      %s21 = sphi 0, %s33
      %s22 = sphi 0, %s29
      %s23 = sphi 0, %s21
      %s24 = sphi 0, %s22
      %s25 = sphi 0, %s23
      %s26 = sphi 0, %s24
      %s38 = sphi 0, %s40
      %s41 = sphi 0, %s38
      %s42 = sphi 0, %s41
      %s58 = sphi 0, %s42
      %s62 = sphi 0, %s62
      %s64 = sphi 0, %s62
      %s65 = sphi 0, %s64
      %s79 = sphi 0, %s65
      %s87 = sphi 0, %s89
      %s90 = sphi 0, %s87
      %s91 = sphi 0, %s90
      %s107 = sphi 0, %s91
    $region4: #{tpu_custom_call.1} parent=1 // loop_header_branch
      %17 = sbr.rel (%p15) target = $region8
    $region5: #{tpu_custom_call.1} parent=1 // loop_body
      %s19 = ssub.s32 %s14, 1
      %s20 = ssub.s32 %s14, 2
      %s27 = sadd.s32 1, %s22
      %p28 = scmp.ge.s32.totalorder %s27, 1
      %s29 = scalar_select %p28, 0, %s27
      %s30 = sadd.s32 1, %s21
      %s31 = scalar_select %p28, %s30, %s21
      %p32 = scmp.ge.s32.totalorder %s31, 2
      %s33 = scalar_select %p32, 0, %s31
      %s34 = ssub.s32 %s21, %s33
      %s35 = ssub.s32 %s22, %s29
      %s36 = sor.u32 %s34, %s35
      %p37 = scmp.eq.s32.totalorder %s36, 0
      %s39 = sadd.s32 %s38, 1
      %s40 = scalar_select %p37, %s38, %s39
      %p43 = pneg %p37
      %p44 = scmp.eq.s32.totalorder %s14, 1
      %p45 = por %p43, %p44
      %p46 = scmp.ne.s32.totalorder %s38, %s41
      %p47 = scmp.eq.s32.totalorder %s14, 0
      %p48 = por %p46, %p47
      %p49 = scmp.ne.s32.totalorder %s38, %s41
      %p50 = scmp.eq.s32.totalorder %s19, 1
      %p51 = por %p49, %p50
      %p52 = scmp.ne.s32.totalorder %s41, %s42
      %p53 = scmp.eq.s32.totalorder %s19, 0
      %p54 = por %p52, %p53
      %p55 = scmp.ne.s32.totalorder %s41, %s42
      %p56 = scmp.eq.s32.totalorder %s20, 1
      %p57 = por %p55, %p56
      %p59 = scmp.ne.s32.totalorder %s42, %s58
      %p60 = scmp.eq.s32.totalorder %s20, 0
      %p61 = por %p59, %p60
      %s63 = sadd.s32 %s62, 1
      %p66 = scmp.eq.s32.totalorder %s14, 1
      %p67 = scmp.ne.s32.totalorder %s62, %s64
      %p68 = scmp.eq.s32.totalorder %s14, 0
      %p69 = por %p67, %p68
      %p70 = scmp.ne.s32.totalorder %s62, %s64
      %p71 = scmp.eq.s32.totalorder %s19, 1
      %p72 = por %p70, %p71
      %p73 = scmp.ne.s32.totalorder %s64, %s65
      %p74 = scmp.eq.s32.totalorder %s19, 0
      %p75 = por %p73, %p74
      %p76 = scmp.ne.s32.totalorder %s64, %s65
      %p77 = scmp.eq.s32.totalorder %s20, 1
      %p78 = por %p76, %p77
      %p80 = scmp.ne.s32.totalorder %s65, %s79
      %p81 = scmp.eq.s32.totalorder %s20, 0
      %p82 = por %p80, %p81
      %s83 = ssub.s32 %s21, %s33
      %s84 = ssub.s32 %s22, %s29
      %s85 = sor.u32 %s83, %s84
      %p86 = scmp.eq.s32.totalorder %s85, 0
      %s88 = sadd.s32 %s87, 1
      %s89 = scalar_select %p86, %s87, %s88
      %p92 = pneg %p86
      %p93 = scmp.eq.s32.totalorder %s14, 1
      %p94 = por %p92, %p93
      %p95 = scmp.ne.s32.totalorder %s87, %s90
      %p96 = scmp.eq.s32.totalorder %s14, 0
      %p97 = por %p95, %p96
      %p98 = scmp.ne.s32.totalorder %s87, %s90
      %p99 = scmp.eq.s32.totalorder %s19, 1
      %p100 = por %p98, %p99
      %p101 = scmp.ne.s32.totalorder %s90, %s91
      %p102 = scmp.eq.s32.totalorder %s19, 0
      %p103 = por %p101, %p102
      %p104 = scmp.ne.s32.totalorder %s90, %s91
      %p105 = scmp.eq.s32.totalorder %s20, 1
      %p106 = por %p104, %p105
      %p108 = scmp.ne.s32.totalorder %s91, %s107
      %p109 = scmp.eq.s32.totalorder %s20, 0
      %p110 = por %p108, %p109
      %p111 = scmp.le.s32.totalorder 1, %s14
      %p112 = scmp.lt.s32.totalorder %s14, 3
      %p113 = pnand %p111, %p112
      %p114 = pneg %p113
      // Predicated region
      $region9: #{tpu_custom_call.1} parent=5 // pred_check
        _
      $region10: #{tpu_custom_call.1} parent=5 // pred_check_branch
        %116 = sbr.rel (%p113) target = $region12
      $region11: #{tpu_custom_call.1} parent=5 // pred_region
        %s117 = ssub.s32 %s14, 1
        // Predicated region
        $region13: #{tpu_custom_call.1} parent=11 // pred_check
          %p118 = pneg %p75
        $region14: #{tpu_custom_call.1} parent=11 // pred_check_branch
          %120 = sbr.rel (%p118) target = $region16
        $region15: #{tpu_custom_call.1} parent=11 // pred_region
          _
        $region16: #{tpu_custom_call.1} parent=11 // pred_fallthru
          _
      $region12: #{tpu_custom_call.1} parent=5 // pred_fallthru
        _
      %p121 = scmp.lt.s32.totalorder %s14, 2
      // Predicated region
      $region17: #{tpu_custom_call.1} parent=5 // pred_check
        %p122 = pneg %p121
      $region18: #{tpu_custom_call.1} parent=5 // pred_check_branch
        %124 = sbr.rel (%p122) target = $region20
      $region19: #{tpu_custom_call.1} parent=5 // pred_region
        // Predicated region
        $region21: #{tpu_custom_call.1} parent=19 // pred_check
          %p125 = pneg %p48
        $region22: #{tpu_custom_call.1} parent=19 // pred_check_branch
          %127 = sbr.rel (%p125) target = $region24
        $region23: #{tpu_custom_call.1} parent=19 // pred_region
          %s128 = sand.u32 %s38, 1
          %s129 = scalar_lea.sflag [#allocation3], %s128
          %s130 = sand.u32 %s38, 1
          %s131 = smul.addr %s130, 8
          %s132 = scalar_lea.vmem [#allocation2], %s131
          %134 = vsyncadd %s129, 0
          %s135 = smul.addr %s21, 4
          %s136 = sadd.s32 %s22, %s135
          %s137 = smul.addr %s136, 2
          %s138 = scalar_lea.hbm %s0, %s137
          %s139 = sshll.u32 %s138, 4
          %s140 = int_to_ptr.hbm [resolvable:$true] %s139
          %s141 = sshll.u32 %s132, 4
          %s142 = int_to_ptr.vmem [resolvable:$true] %s141
          %147 = dma.hbm_to_vmem [thread:$0]  %s140, 128, %s142, %s129, 32, 32, 2
        $region24: #{tpu_custom_call.1} parent=19 // pred_fallthru
          _
      $region20: #{tpu_custom_call.1} parent=5 // pred_fallthru
        _
      %p148 = scmp.le.s32.totalorder 1, %s14
      %p149 = scmp.lt.s32.totalorder %s14, 3
      %p150 = pnand %p148, %p149
      %p151 = pneg %p150
      // Predicated region
      $region25: #{tpu_custom_call.1} parent=5 // pred_check
        _
      $region26: #{tpu_custom_call.1} parent=5 // pred_check_branch
        %153 = sbr.rel (%p150) target = $region28
      $region27: #{tpu_custom_call.1} parent=5 // pred_region
        %s154 = ssub.s32 %s14, 1
        %s155 = sand.u32 %s41, 1
        %s156 = scalar_lea.sflag [#allocation3], %s155
        %s157 = sand.u32 %s41, 1
        %s158 = smul.addr %s157, 8
        %s159 = scalar_lea.vmem [#allocation2], %s158
        // Predicated region
        $region29: #{tpu_custom_call.1} parent=27 // pred_check
          %p160 = pneg %p54
        $region30: #{tpu_custom_call.1} parent=27 // pred_check_branch
          %162 = sbr.rel (%p160) target = $region32
        $region31: #{tpu_custom_call.1} parent=27 // pred_region
          %164 = dma.done %s156, 128
        $region32: #{tpu_custom_call.1} parent=27 // pred_fallthru
          _
        %s165 = sand.u32 %s41, 1
        %s166 = scalar_lea.sflag [#allocation3], %s165
        %s167 = sand.u32 %s41, 1
        %s168 = smul.addr %s167, 8
        %s169 = scalar_lea.vmem [#allocation2], %s168
        %p170 = pneg %p54
        %p171 = pneg %p51
        %p172 = pneg %p75
        %p173 = pneg %p72
        %p174 = pneg %p103
        %p175 = pneg %p100
        %s176 = sand.u32 %s90, 1
        %s177 = scalar_lea.sflag [#allocation4], %s176
        %s178 = sand.u32 %s90, 1
        %s179 = smul.addr %s178, 8
        %s180 = scalar_lea.vmem [#allocation5], %s179
        %v181 = vld [vmem:[%s159] sm:$0x3]
        %v182 = vld [vmem:[%s159 + $0x2] sm:$0x3]
        %v183 = vld [vmem:[%s159 + $0x4] sm:$0x3]
        %v184 = vld [vmem:[%s159 + $0x6] sm:$0x3]
        %v185 = vld [vmem:[%s1] sm:$0x1]
        %v186 = vld [vmem:[%s1 + $0x1] sm:$0x1]
        %v187 = vld [vmem:[%s1 + $0x2] sm:$0x1]
        %v188 = vld [vmem:[%s1 + $0x3] sm:$0x1]
        %v189 = vmul.f32 %v181, %v181
        %v190 = vmul.f32 %v182, %v182
        %v191 = vmul.f32 %v183, %v183
        %v192 = vmul.f32 %v184, %v184
        %vm193 = vcmask 1041408
        %v194 = vsel %vm193, %v189, 0.0
        %v195 = vsel %vm193, %v190, 0.0
        %v196 = vadd.f32 %v194, %v195
        %v197 = vsel %vm193, %v191, 0.0
        %v198 = vadd.f32 %v196, %v197
        %v199 = vsel %vm193, %v192, 0.0
        %v200 = vadd.f32 %v198, %v199
        %v201 = vmax.f32 %v200, 1e-24
        %v202 = vrsqrt.pop %v201
        %v203 = vmul.f32 %v202, %v201
        %v204 = vmul.f32 %v203, %v202
        %v205 = vmul.f32 0.5, %v204
        %v206 = vsub.f32 1.5, %v205
        %v207 = vmul.f32 %v202, %v206
        %vm208 = vweird.f32 %v201
        %vm209 = vweird.f32 %v202
        %vm210 = vmor %vm208, %vm209
        %v211 = vsel %vm210, %v202, %v207
        %v212 = vmul.f32 %v181, %v211
        %v213 = vmul.f32 %v182, %v211
        %v214 = vmul.f32 %v183, %v211
        %v215 = vmul.f32 %v184, %v211
        %v220 = vperm.slane %v185, 0
        %v221 = vperm.slane %v186, 0
        %v222 = vperm.slane %v187, 0
        %v223 = vperm.slane %v188, 0
        %224 = vset.pattern.permute.xlu0 0
        %225 = vperm.xlu0 %224, %v220
        %v226 = vpop.permute.xlu0 %225
        %228 = vset.pattern.permute.xlu0 0
        %229 = vperm.xlu0 %228, %v221
        %v230 = vpop.permute.xlu0 %229
        %232 = vset.pattern.permute.xlu0 0
        %233 = vperm.xlu0 %232, %v222
        %v234 = vpop.permute.xlu0 %233
        %236 = vset.pattern.permute.xlu0 0
        %237 = vperm.xlu0 %236, %v223
        %v238 = vpop.permute.xlu0 %237
        %v240 = vmul.f32 %v212, %v226
        %v241 = vmul.f32 %v213, %v230
        %v242 = vmul.f32 %v214, %v234
        %v243 = vmul.f32 %v215, %v238
        %244 = vst [vmem:[%s180] sm:$0x3] %v240
        %245 = vst [vmem:[%s180 + $0x2] sm:$0x3] %v241
        %246 = vst [vmem:[%s180 + $0x4] sm:$0x3] %v242
        %247 = vst [vmem:[%s180 + $0x6] sm:$0x3] %v243
        %s248 = sand.u32 %s90, 1
        %s249 = scalar_lea.sflag [#allocation4], %s248
        %s250 = sand.u32 %s90, 1
        %s251 = smul.addr %s250, 8
        %s252 = scalar_lea.vmem [#allocation5], %s251
        // Predicated region
        $region33: #{tpu_custom_call.1} parent=27 // pred_check
          %p253 = pneg %p100
        $region34: #{tpu_custom_call.1} parent=27 // pred_check_branch
          %255 = sbr.rel (%p253) target = $region36
        $region35: #{tpu_custom_call.1} parent=27 // pred_region
          %257 = vsyncadd %s249, 0
          %s258 = smul.addr %s23, 4
          %s259 = sadd.s32 %s24, %s258
          %s260 = smul.addr %s259, 2
          %s261 = scalar_lea.hbm %s2, %s260
          %s262 = sshll.u32 %s252, 4
          %s263 = int_to_ptr.vmem [resolvable:$true] %s262
          %s264 = sshll.u32 %s261, 4
          %s265 = int_to_ptr.hbm [resolvable:$true] %s264
          %270 = dma.vmem_to_hbm [thread:$0]  %s263, 128, %s265, %s249, 32, 32, 2
        $region36: #{tpu_custom_call.1} parent=27 // pred_fallthru
          _
      $region28: #{tpu_custom_call.1} parent=5 // pred_fallthru
        _
      %p271 = scmp.le.s32.totalorder 2, %s14
      // Predicated region
      $region37: #{tpu_custom_call.1} parent=5 // pred_check
        %p272 = pneg %p271
      $region38: #{tpu_custom_call.1} parent=5 // pred_check_branch
        %274 = sbr.rel (%p272) target = $region40
      $region39: #{tpu_custom_call.1} parent=5 // pred_region
        %s275 = ssub.s32 %s14, 2
        // Predicated region
        $region41: #{tpu_custom_call.1} parent=39 // pred_check
          %p276 = pneg %p106
        $region42: #{tpu_custom_call.1} parent=39 // pred_check_branch
          %278 = sbr.rel (%p276) target = $region44
        $region43: #{tpu_custom_call.1} parent=39 // pred_region
          %s279 = sand.u32 %s91, 1
          %s280 = scalar_lea.sflag [#allocation4], %s279
          %s281 = sand.u32 %s91, 1
          %s282 = smul.addr %s281, 8
          %s283 = scalar_lea.vmem [#allocation5], %s282
          %285 = dma.done %s280, 128
        $region44: #{tpu_custom_call.1} parent=39 // pred_fallthru
          _
      $region40: #{tpu_custom_call.1} parent=5 // pred_fallthru
        _
    $region6: #{tpu_custom_call.1} parent=1 // loop_footer
      %s18 = sadd.s32 1, %s14
    $region7: #{tpu_custom_call.1} parent=1 // loop_footer_branch
      %13 = sbr.rel target = $region3
    $region8: #{tpu_custom_call.1} parent=1 // loop_exit
      _
    %286 = vsyncpa [#allocation3], 1
    %s287 = scalar_lea.sflag [#allocation3], 1
    %288 = vsyncpa %s287, 1
    %289 = vsyncpa [#allocation4], 1
    %s290 = scalar_lea.sflag [#allocation4], 1
    %291 = vsyncpa %s290, 1

</llo_original>
